<compile_context>
chip_gen: v6e
topology: v6e:2x2x1
jax: 0.10.0
libtpu: 0.0.40
codegen_flags: <defaults>
</compile_context>

<pallas_src>
import jax
import jax.numpy as jnp
from jax.experimental import pallas as pl
from jax.experimental.pallas import tpu as pltpu


# (fan_in, fan_out) per layer, matching the PyTorch module: 20->10->8->8->4->1
_LAYER_DIMS = ((20, 10), (10, 8), (8, 8), (8, 4), (4, 1))


def _round_up(n, m):
    return ((n + m - 1) // m) * m


def _param_offsets():
    offs = []
    off = 0
    for (_, fan_out) in _LAYER_DIMS:
        offs.append(off)
        off += _round_up(fan_out, 8)  # keep every slice sublane-aligned
    return tuple(offs), off


_OFFSETS, _PACK_ROWS = _param_offsets()          # (0, 16, 24, 32, 40), 48 rows
_MAX_IN = max(fi for fi, _ in _LAYER_DIMS)       # 20


def _mlp_kernel(x_ref, w_ref, b_ref, o_ref):
    """x_ref: [20, TB] bf16 (features on sublane, batch on lane).
    w_ref: [48, 20] bf16 packed weights ([out, in] per layer, zero-padded).
    b_ref: [48, 1]  f32 packed biases.
    o_ref: [1, TB]  f32 output (lane-dense)."""
    h = x_ref[...]          # bf16 [20, TB]
    W = w_ref[...]          # bf16 [48, 20]
    bs = b_ref[...]         # f32  [48, 1]

    n_layers = len(_LAYER_DIMS)
    for idx, ((fan_in, fan_out), off) in enumerate(zip(_LAYER_DIMS, _OFFSETS)):
        w = W[off:off + fan_out, 0:fan_in]          # [out, in] bf16
        b = bs[off:off + fan_out, :]                # [out, 1]  f32
        # [out, in] @ [in, TB] -> [out, TB], f32 accumulation on the MXU.
        z = jnp.dot(w, h, preferred_element_type=jnp.float32) + b
        if idx < n_layers - 1:
            h = jnp.maximum(z, 0.0).astype(jnp.bfloat16)   # ReLU, back to bf16
        else:
            # Sigmoid: exp and approx-reciprocal both land on the EUP slot.
            o_ref[...] = pl.reciprocal(1.0 + jnp.exp(-z), approx=True)


def deep_neural_network_forward(x, params, *, tb=512):
    """x: [B, 20] float32; params: list of (W[in,out], b[1,out]) for 5 layers."""
    B, F = x.shape
    assert F == _LAYER_DIMS[0][0], (B, F)

    # Batch tile: multiple of 128 lanes; shrink for small batches; pad B up.
    tb = max(128, _round_up(tb, 128))
    tb = min(tb, _round_up(B, 128))
    b_pad = _round_up(B, tb)
    num_blocks = b_pad // tb

    # Features-on-sublane / batch-on-lane layout; stream x in bf16.
    x_t = x.T.astype(jnp.bfloat16)                   # [20, B]
    if b_pad != B:
        x_t = jnp.pad(x_t, ((0, 0), (0, b_pad - B)))  # padded cols are sliced off

    # Pack all weights ([out, in]) and biases ([out, 1]) into two small slabs.
    wpack = jnp.zeros((_PACK_ROWS, _MAX_IN), jnp.float32)
    bpack = jnp.zeros((_PACK_ROWS, 1), jnp.float32)
    for (w, b), off, (fi, fo) in zip(params, _OFFSETS, _LAYER_DIMS):
        wpack = wpack.at[off:off + fo, 0:fi].set(w.T)
        bpack = bpack.at[off:off + fo, :].set(b.reshape(fo, 1))
    wpack = wpack.astype(jnp.bfloat16)

    flops = 2 * sum(fi * fo for fi, fo in _LAYER_DIMS) * b_pad
    bytes_accessed = x_t.size * 2 + b_pad * 4 + wpack.size * 2 + bpack.size * 4

    out = pl.pallas_call(
        _mlp_kernel,
        out_shape=jax.ShapeDtypeStruct((1, b_pad), jnp.float32),
        grid=(num_blocks,),
        in_specs=[
            pl.BlockSpec((F, tb), lambda i: (0, i)),           # x tile per step
            pl.BlockSpec(wpack.shape, lambda i: (0, 0)),       # VMEM-resident
            pl.BlockSpec(bpack.shape, lambda i: (0, 0)),       # VMEM-resident
        ],
        out_specs=pl.BlockSpec((1, tb), lambda i: (0, i)),
        compiler_params=pltpu.CompilerParams(
            dimension_semantics=("parallel",),   # shards across v7x's 2 TCs
            vmem_limit_bytes=32 * 1024 * 1024,
        ),
        cost_estimate=pl.CostEstimate(
            flops=flops, transcendentals=b_pad, bytes_accessed=bytes_accessed),
    )(x_t, wpack, bpack)

    # [1, b_pad] -> [B, 1] (drop padded batch columns, back to torch layout).
    return out[:, :B].T


def init_params(key):
    """Deterministic init matching the PyTorch module's layer shapes.

    nn.Linear(in, out) stores weight [out, in]; we keep the transposed
    [in, out] layout here so the reference is a plain x @ W + b.
    """
    params = []
    for (fan_in, fan_out) in _LAYER_DIMS:
        key, wk, bk = jax.random.split(key, 3)
        bound = 1.0 / jnp.sqrt(fan_in)  # PyTorch default U(-1/sqrt(in), 1/sqrt(in))
        w = jax.random.uniform(wk, (fan_in, fan_out), jnp.float32, -bound, bound)
        b = jax.random.uniform(bk, (1, fan_out), jnp.float32, -bound, bound)
        params.append((w, b))
    return params


def reference_forward(x, params):
    """Pure-JAX reference using the same bf16-inputs / f32-accumulation recipe."""
    h = x
    n = len(params)
    for i, (w, b) in enumerate(params):
        z = jnp.dot(h.astype(jnp.bfloat16), w.astype(jnp.bfloat16),
                    preferred_element_type=jnp.float32) + b
        if i < n - 1:
            h = jnp.maximum(z, 0.0)
        else:
            h = 1.0 / (1.0 + jnp.exp(-z))
    return h


if __name__ == "__main__":
    key = jax.random.PRNGKey(0)
    key, xk = jax.random.split(key)

    B = 200  # deliberately not a multiple of 128 to exercise the padding path
    x = jax.random.normal(xk, (B, 20), dtype=jnp.float32)

    params = init_params(key)

    out = deep_neural_network_forward(x, params, tb=128)  # 2-step batch grid
    out = jax.block_until_ready(out)

    ref = reference_forward(x, params)
    assert out.shape == (B, 1), out.shape
    assert jnp.allclose(out, ref, atol=1e-3, rtol=1e-3), (out, ref)

    print("KERNEL_OK")
</pallas_src>

<mosaic_0001>
module attributes {stable_mosaic.version = 11 : i64} {
  func.func @_mlp_kernel(%arg0: i32, %arg1: memref<20x128xbf16, #tpu.memory_space<vmem>>, %arg2: memref<48x20xbf16, #tpu.memory_space<vmem>>, %arg3: memref<48x1xf32, #tpu.memory_space<vmem>>, %arg4: memref<1x128xf32, #tpu.memory_space<vmem>>) attributes {dimension_semantics = [#tpu.dimension_semantics<parallel>], iteration_bounds = array<i64: 2>, scalar_prefetch = 0 : i64, scratch_operands = 0 : i64, tpu.core_type = #tpu.core_type<tc>, window_params = [{transform_indices = @transform_0, window_bounds = array<i64: 20, 128>}, {pipeline_mode = #tpu.pipeline_mode<synchronous>, transform_indices = @transform_1, window_bounds = array<i64: 48, 20>}, {pipeline_mode = #tpu.pipeline_mode<synchronous>, transform_indices = @transform_2, window_bounds = array<i64: 48, 1>}, {transform_indices = @transform_3, window_bounds = array<i64: 1, 128>}]} {
    %c0 = arith.constant 0 : index
    %c0_0 = arith.constant 0 : index
    %0 = vector.load %arg1[%c0, %c0_0] : memref<20x128xbf16, #tpu.memory_space<vmem>>, vector<20x128xbf16>
    %c0_1 = arith.constant 0 : index
    %c0_2 = arith.constant 0 : index
    %1 = vector.load %arg2[%c0_1, %c0_2] : memref<48x20xbf16, #tpu.memory_space<vmem>>, vector<48x20xbf16>
    %c0_3 = arith.constant 0 : index
    %c0_4 = arith.constant 0 : index
    %2 = vector.load %arg3[%c0_3, %c0_4] : memref<48x1xf32, #tpu.memory_space<vmem>>, vector<48x1xf32>
    %3 = vector.extract_strided_slice %1 {offsets = [0, 0], sizes = [10, 20], strides = [1, 1]} : vector<48x20xbf16> to vector<10x20xbf16>
    %4 = vector.extract_strided_slice %2 {offsets = [0, 0], sizes = [10, 1], strides = [1, 1]} : vector<48x1xf32> to vector<10x1xf32>
    %cst = arith.constant dense<0.000000e+00> : vector<10x128xf32>
    %5 = tpu.matmul %3, %0, %cst {dimension_numbers = #tpu.dot_dimension_numbers<[1], [0], [0], [1], [0, 0, 1, 1], [], []>} : vector<10x20xbf16>, vector<20x128xbf16>, vector<10x128xf32> -> vector<10x128xf32>
    %6 = vector.broadcast %4 : vector<10x1xf32> to vector<10x128xf32>
    %7 = arith.addf %5, %6 : vector<10x128xf32>
    %cst_5 = arith.constant 0.000000e+00 : f32
    %8 = vector.broadcast %cst_5 : f32 to vector<10x128xf32>
    %9 = arith.maximumf %7, %8 : vector<10x128xf32>
    %10 = arith.truncf %9 : vector<10x128xf32> to vector<10x128xbf16>
    %11 = vector.extract_strided_slice %1 {offsets = [16, 0], sizes = [8, 10], strides = [1, 1]} : vector<48x20xbf16> to vector<8x10xbf16>
    %12 = vector.extract_strided_slice %2 {offsets = [16, 0], sizes = [8, 1], strides = [1, 1]} : vector<48x1xf32> to vector<8x1xf32>
    %cst_6 = arith.constant dense<0.000000e+00> : vector<8x128xf32>
    %13 = tpu.matmul %11, %10, %cst_6 {dimension_numbers = #tpu.dot_dimension_numbers<[1], [0], [0], [1], [0, 0, 1, 1], [], []>} : vector<8x10xbf16>, vector<10x128xbf16>, vector<8x128xf32> -> vector<8x128xf32>
    %14 = vector.broadcast %12 : vector<8x1xf32> to vector<8x128xf32>
    %15 = arith.addf %13, %14 : vector<8x128xf32>
    %cst_7 = arith.constant 0.000000e+00 : f32
    %16 = vector.broadcast %cst_7 : f32 to vector<8x128xf32>
    %17 = arith.maximumf %15, %16 : vector<8x128xf32>
    %18 = arith.truncf %17 : vector<8x128xf32> to vector<8x128xbf16>
    %19 = vector.extract_strided_slice %1 {offsets = [24, 0], sizes = [8, 8], strides = [1, 1]} : vector<48x20xbf16> to vector<8x8xbf16>
    %20 = vector.extract_strided_slice %2 {offsets = [24, 0], sizes = [8, 1], strides = [1, 1]} : vector<48x1xf32> to vector<8x1xf32>
    %cst_8 = arith.constant dense<0.000000e+00> : vector<8x128xf32>
    %21 = tpu.matmul %19, %18, %cst_8 {dimension_numbers = #tpu.dot_dimension_numbers<[1], [0], [0], [1], [0, 0, 1, 1], [], []>} : vector<8x8xbf16>, vector<8x128xbf16>, vector<8x128xf32> -> vector<8x128xf32>
    %22 = vector.broadcast %20 : vector<8x1xf32> to vector<8x128xf32>
    %23 = arith.addf %21, %22 : vector<8x128xf32>
    %cst_9 = arith.constant 0.000000e+00 : f32
    %24 = vector.broadcast %cst_9 : f32 to vector<8x128xf32>
    %25 = arith.maximumf %23, %24 : vector<8x128xf32>
    %26 = arith.truncf %25 : vector<8x128xf32> to vector<8x128xbf16>
    %27 = vector.extract_strided_slice %1 {offsets = [32, 0], sizes = [4, 8], strides = [1, 1]} : vector<48x20xbf16> to vector<4x8xbf16>
    %28 = vector.extract_strided_slice %2 {offsets = [32, 0], sizes = [4, 1], strides = [1, 1]} : vector<48x1xf32> to vector<4x1xf32>
    %cst_10 = arith.constant dense<0.000000e+00> : vector<4x128xf32>
    %29 = tpu.matmul %27, %26, %cst_10 {dimension_numbers = #tpu.dot_dimension_numbers<[1], [0], [0], [1], [0, 0, 1, 1], [], []>} : vector<4x8xbf16>, vector<8x128xbf16>, vector<4x128xf32> -> vector<4x128xf32>
    %30 = vector.broadcast %28 : vector<4x1xf32> to vector<4x128xf32>
    %31 = arith.addf %29, %30 : vector<4x128xf32>
    %cst_11 = arith.constant 0.000000e+00 : f32
    %32 = vector.broadcast %cst_11 : f32 to vector<4x128xf32>
    %33 = arith.maximumf %31, %32 : vector<4x128xf32>
    %34 = arith.truncf %33 : vector<4x128xf32> to vector<4x128xbf16>
    %35 = vector.extract_strided_slice %1 {offsets = [40, 0], sizes = [1, 4], strides = [1, 1]} : vector<48x20xbf16> to vector<1x4xbf16>
    %36 = vector.extract_strided_slice %2 {offsets = [40, 0], sizes = [1, 1], strides = [1, 1]} : vector<48x1xf32> to vector<1x1xf32>
    %cst_12 = arith.constant dense<0.000000e+00> : vector<1x128xf32>
    %37 = tpu.matmul %35, %34, %cst_12 {dimension_numbers = #tpu.dot_dimension_numbers<[1], [0], [0], [1], [0, 0, 1, 1], [], []>} : vector<1x4xbf16>, vector<4x128xbf16>, vector<1x128xf32> -> vector<1x128xf32>
    %38 = vector.broadcast %36 : vector<1x1xf32> to vector<1x128xf32>
    %39 = arith.addf %37, %38 : vector<1x128xf32>
    %cst_13 = arith.constant 0.000000e+00 : f32
    %40 = vector.broadcast %cst_13 : f32 to vector<1x128xf32>
    %41 = arith.subf %40, %39 : vector<1x128xf32>
    %42 = math.exp %41 : vector<1x128xf32>
    %cst_14 = arith.constant 1.000000e+00 : f32
    %43 = vector.broadcast %cst_14 : f32 to vector<1x128xf32>
    %44 = arith.addf %43, %42 : vector<1x128xf32>
    %45 = tpu.reciprocal %44 {approx = true} : vector<1x128xf32> -> vector<1x128xf32>
    %c0_15 = arith.constant 0 : index
    %c0_16 = arith.constant 0 : index
    %46 = vector.load %arg4[%c0_15, %c0_16] : memref<1x128xf32, #tpu.memory_space<vmem>>, vector<1x128xf32>
    tpu.vector_store %arg4[%c0_15, %c0_16], %45 {strides = array<i32>} : memref<1x128xf32, #tpu.memory_space<vmem>>, vector<1x128xf32>,
    return
  }
  func.func @transform_0(%arg0: i32) -> (i32, i32) {
    %c0_i32 = arith.constant 0 : i32
    %c0_i32_0 = arith.constant 0 : i32
    return %c0_i32, %arg0 : i32, i32
  }
  func.func @transform_1(%arg0: i32) -> (i32, i32) {
    %c0_i32 = arith.constant 0 : i32
    %c0_i32_0 = arith.constant 0 : i32
    %c0_i32_1 = arith.constant 0 : i32
    return %c0_i32, %c0_i32_0 : i32, i32
  }
  func.func @transform_2(%arg0: i32) -> (i32, i32) {
    %c0_i32 = arith.constant 0 : i32
    %c0_i32_0 = arith.constant 0 : i32
    %c0_i32_1 = arith.constant 0 : i32
    return %c0_i32, %c0_i32_0 : i32, i32
  }
  func.func @transform_3(%arg0: i32) -> (i32, i32) {
    %c0_i32 = arith.constant 0 : i32
    %c0_i32_0 = arith.constant 0 : i32
    return %c0_i32, %arg0 : i32, i32
  }
}

</mosaic_0001>

<llo_original>
// kernel: tpu_custom_call.1
$region0: #{tpu_custom_call.1}
  #allocation0 [shape = 'u32[]', space=smem, size = 0x4, offset = 0x4, fixed_abs, tag = 'smem constant byte address 0x4 - core index']
  #allocation1 [shape = 'u32[144,128]{1,0:T(1,128)}', space=vmem, size = 0x12000, scoped, tag = 'internal scratch']
  %s0 = inlined_call_operand.vmem [shape: bf16[20,256], index: 0, kind: input, shape index: {}]
  %s1 = inlined_call_operand.vmem [shape: bf16[48,20], index: 1, kind: input, shape index: {}]
  %s2 = inlined_call_operand.vmem [shape: f32[48,1], index: 2, kind: input, shape index: {}]
  %s3 = inlined_call_operand.hbm [shape: f32[1,256], index: 3, kind: output, shape index: {}]
  %s4 = sld [smem:[#allocation0]]
  $region86: #{tpu_custom_call.1} parent=0
    _
  %s6 = ssub.s32 1, %s4
  %s7 = scalar_select 0, %s6, %s4
  $region1: #{tpu_custom_call.1} parent=0
    #allocation2 [shape = 'u8[12288]{0}', space=vmem, size = 0x3000, scoped, tag = 'input window, operand 0']
    #allocation3 [shape = 'u8[1024]{0}', space=vmem, size = 0x400, scoped, tag = 'output window, operand 0']
    #allocation4 [shape = 's32[2]{0}', space=sflag, size = 0x8, scoped, tag = 'scoped memory for tpu_custom_call.1']
    %8 = vsyncpa [#allocation4], 0
    %s9 = scalar_lea.sflag [#allocation4], 1
    %10 = vsyncpa %s9, 0
    loop: start=0, step=1, limit=4
    $region2: #{tpu_custom_call.1} parent=1 // loop_pre_header
      _
    $region3: #{tpu_custom_call.1} parent=1 // loop_header
      %s12 = sphi 0, %s16
      %p13 = scmp.ge.s32.totalorder %s12, 4
      %s22 = sphi 0, %s24
      %s25 = sphi 0, %s22
      %s26 = sphi 0, %s25
      %s42 = sphi 0, %s26
      %s46 = sphi 0, %s46
      %s48 = sphi 0, %s46
      %s49 = sphi 0, %s48
      %s63 = sphi 0, %s49
      %s67 = sphi 0, %s67
      %s69 = sphi 0, %s67
      %s70 = sphi 0, %s69
      %s84 = sphi 0, %s70
      %s90 = sphi 0, %s92
      %s93 = sphi 0, %s90
      %s94 = sphi 0, %s93
      %s110 = sphi 0, %s94
    $region4: #{tpu_custom_call.1} parent=1 // loop_header_branch
      %15 = sbr.rel (%p13) target = $region8
    $region5: #{tpu_custom_call.1} parent=1 // loop_body
      %s17 = ssub.s32 %s12, 1
      %s18 = ssub.s32 %s12, 2
      %s19 = sadd.s32 %s12, 1
      %s20 = ssub.s32 %s12, %s19
      %p21 = scmp.eq.s32.totalorder %s20, 0
      %s23 = sadd.s32 %s22, 1
      %s24 = scalar_select %p21, %s22, %s23
      %p27 = pneg %p21
      %p28 = scmp.eq.s32.totalorder %s12, 1
      %p29 = por %p27, %p28
      %p30 = scmp.ne.s32.totalorder %s22, %s25
      %p31 = scmp.eq.s32.totalorder %s12, 0
      %p32 = por %p30, %p31
      %p33 = scmp.ne.s32.totalorder %s22, %s25
      %p34 = scmp.eq.s32.totalorder %s17, 1
      %p35 = por %p33, %p34
      %p36 = scmp.ne.s32.totalorder %s25, %s26
      %p37 = scmp.eq.s32.totalorder %s17, 0
      %p38 = por %p36, %p37
      %p39 = scmp.ne.s32.totalorder %s25, %s26
      %p40 = scmp.eq.s32.totalorder %s18, 1
      %p41 = por %p39, %p40
      %p43 = scmp.ne.s32.totalorder %s26, %s42
      %p44 = scmp.eq.s32.totalorder %s18, 0
      %p45 = por %p43, %p44
      %s47 = sadd.s32 %s46, 1
      %p50 = scmp.eq.s32.totalorder %s12, 1
      %p51 = scmp.ne.s32.totalorder %s46, %s48
      %p52 = scmp.eq.s32.totalorder %s12, 0
      %p53 = por %p51, %p52
      %p54 = scmp.ne.s32.totalorder %s46, %s48
      %p55 = scmp.eq.s32.totalorder %s17, 1
      %p56 = por %p54, %p55
      %p57 = scmp.ne.s32.totalorder %s48, %s49
      %p58 = scmp.eq.s32.totalorder %s17, 0
      %p59 = por %p57, %p58
      %p60 = scmp.ne.s32.totalorder %s48, %s49
      %p61 = scmp.eq.s32.totalorder %s18, 1
      %p62 = por %p60, %p61
      %p64 = scmp.ne.s32.totalorder %s49, %s63
      %p65 = scmp.eq.s32.totalorder %s18, 0
      %p66 = por %p64, %p65
      %s68 = sadd.s32 %s67, 1
      %p71 = scmp.eq.s32.totalorder %s12, 1
      %p72 = scmp.ne.s32.totalorder %s67, %s69
      %p73 = scmp.eq.s32.totalorder %s12, 0
      %p74 = por %p72, %p73
      %p75 = scmp.ne.s32.totalorder %s67, %s69
      %p76 = scmp.eq.s32.totalorder %s17, 1
      %p77 = por %p75, %p76
      %p78 = scmp.ne.s32.totalorder %s69, %s70
      %p79 = scmp.eq.s32.totalorder %s17, 0
      %p80 = por %p78, %p79
      %p81 = scmp.ne.s32.totalorder %s69, %s70
      %p82 = scmp.eq.s32.totalorder %s18, 1
      %p83 = por %p81, %p82
      %p85 = scmp.ne.s32.totalorder %s70, %s84
      %p86 = scmp.eq.s32.totalorder %s18, 0
      %p87 = por %p85, %p86
      %s88 = ssub.s32 %s12, %s19
      %p89 = scmp.eq.s32.totalorder %s88, 0
      %s91 = sadd.s32 %s90, 1
      %s92 = scalar_select %p89, %s90, %s91
      %p95 = pneg %p89
      %p96 = scmp.eq.s32.totalorder %s12, 1
      %p97 = por %p95, %p96
      %p98 = scmp.ne.s32.totalorder %s90, %s93
      %p99 = scmp.eq.s32.totalorder %s12, 0
      %p100 = por %p98, %p99
      %p101 = scmp.ne.s32.totalorder %s90, %s93
      %p102 = scmp.eq.s32.totalorder %s17, 1
      %p103 = por %p101, %p102
      %p104 = scmp.ne.s32.totalorder %s93, %s94
      %p105 = scmp.eq.s32.totalorder %s17, 0
      %p106 = por %p104, %p105
      %p107 = scmp.ne.s32.totalorder %s93, %s94
      %p108 = scmp.eq.s32.totalorder %s18, 1
      %p109 = por %p107, %p108
      %p111 = scmp.ne.s32.totalorder %s94, %s110
      %p112 = scmp.eq.s32.totalorder %s18, 0
      %p113 = por %p111, %p112
      %p114 = scmp.le.s32.totalorder 1, %s12
      %p115 = scmp.lt.s32.totalorder %s12, 3
      %p116 = pnand %p114, %p115
      %p117 = pneg %p116
      // Predicated region
      $region9: #{tpu_custom_call.1} parent=5 // pred_check
        _
      $region10: #{tpu_custom_call.1} parent=5 // pred_check_branch
        %119 = sbr.rel (%p116) target = $region12
      $region11: #{tpu_custom_call.1} parent=5 // pred_region
        %s120 = ssub.s32 %s12, 1
        // Predicated region
        $region13: #{tpu_custom_call.1} parent=11 // pred_check
          %p121 = pneg %p59
        $region14: #{tpu_custom_call.1} parent=11 // pred_check_branch
          %123 = sbr.rel (%p121) target = $region16
        $region15: #{tpu_custom_call.1} parent=11 // pred_region
          _
        $region16: #{tpu_custom_call.1} parent=11 // pred_fallthru
          _
        // Predicated region
        $region17: #{tpu_custom_call.1} parent=11 // pred_check
          %p124 = pneg %p80
        $region18: #{tpu_custom_call.1} parent=11 // pred_check_branch
          %126 = sbr.rel (%p124) target = $region20
        $region19: #{tpu_custom_call.1} parent=11 // pred_region
          _
        $region20: #{tpu_custom_call.1} parent=11 // pred_fallthru
          _
      $region12: #{tpu_custom_call.1} parent=5 // pred_fallthru
        _
      %p127 = scmp.lt.s32.totalorder %s12, 2
      // Predicated region
      $region21: #{tpu_custom_call.1} parent=5 // pred_check
        %p128 = pneg %p127
      $region22: #{tpu_custom_call.1} parent=5 // pred_check_branch
        %130 = sbr.rel (%p128) target = $region24
      $region23: #{tpu_custom_call.1} parent=5 // pred_region
        // Predicated region
        $region25: #{tpu_custom_call.1} parent=23 // pred_check
          %p131 = pneg %p32
        $region26: #{tpu_custom_call.1} parent=23 // pred_check_branch
          %133 = sbr.rel (%p131) target = $region28
        $region27: #{tpu_custom_call.1} parent=23 // pred_region
          %s134 = sand.u32 %s22, 1
          %s135 = sand.u32 %s22, 1
          %s136 = smul.addr %s135, 12
          %s137 = scalar_lea.vmem [#allocation2], %s136
          %s138 = smul.addr %s12, 4
          %s139 = scalar_lea.vmem %s0, %s138
          // Predicated region
          $region29: #{tpu_custom_call.1} parent=27 // pred_check
            _
          $region30: #{tpu_custom_call.1} parent=27 // pred_check_branch
            %141 = sbr.rel (0) target = $region32
          $region31: #{tpu_custom_call.1} parent=27 // pred_region
            // Predicated region
            $region33: #{tpu_custom_call.1} parent=31 // pred_check
              _
            $region34: #{tpu_custom_call.1} parent=31 // pred_check_branch
              %143 = sbr.rel target = $region36
            $region35: #{tpu_custom_call.1} parent=31 // pred_region
              // Predicated region
              $region48: #{tpu_custom_call.1} parent=35 // pred_check
                _
              $region49: #{tpu_custom_call.1} parent=35 // pred_check_branch
                %163 = sbr.rel (0) target = $region51
              $region50: #{tpu_custom_call.1} parent=35 // pred_region
                loop: start=0, step=1, limit=1
                $region52: #{tpu_custom_call.1} parent=50 // loop_pre_header
                  _
                $region53: #{tpu_custom_call.1} parent=50 // loop_header
                  %s165 = sphi 0, %s169
                  %p166 = scmp.ge.s32.totalorder %s165, 1
                  %s170 = sphi %s139, %s139
                  %s171 = sphi %s137, %s137
                $region54: #{tpu_custom_call.1} parent=50 // loop_header_branch
                  %168 = sbr.rel (%p166) target = $region58
                $region55: #{tpu_custom_call.1} parent=50 // loop_body
                  _
                $region56: #{tpu_custom_call.1} parent=50 // loop_footer
                  %s169 = sadd.s32 1, %s165
                $region57: #{tpu_custom_call.1} parent=50 // loop_footer_branch
                  %164 = sbr.rel target = $region53
                $region58: #{tpu_custom_call.1} parent=50 // loop_exit
                  _
                %s173 = ssub.s32 16, 1
                loop: start=0, step=1, limit=1
                $region59: #{tpu_custom_call.1} parent=50 // loop_pre_header
                  _
                $region60: #{tpu_custom_call.1} parent=50 // loop_header
                  %s175 = sphi 0, %s179
                  %p176 = scmp.ge.s32.totalorder %s175, 1
                  %s180 = sphi %s139, %s139
                  %s181 = sphi %s137, %s137
                $region61: #{tpu_custom_call.1} parent=50 // loop_header_branch
                  %178 = sbr.rel (%p176) target = $region65
                $region62: #{tpu_custom_call.1} parent=50 // loop_body
                  %v182 = vld [vmem:[%s180] sm:%s173]
                  %183 = vst [vmem:[%s181] sm:%s173] %v182
                  %v184 = vld [vmem:[%s180 + $0x8] sm:%s173]
                  %185 = vst [vmem:[%s181 + $0x4] sm:%s173] %v184
                  %v186 = vld [vmem:[%s180 + $0x10] sm:%s173]
                  %187 = vst [vmem:[%s181 + $0x8] sm:%s173] %v186
                $region63: #{tpu_custom_call.1} parent=50 // loop_footer
                  %s179 = sadd.s32 1, %s175
                $region64: #{tpu_custom_call.1} parent=50 // loop_footer_branch
                  %174 = sbr.rel target = $region60
                $region65: #{tpu_custom_call.1} parent=50 // loop_exit
                  _
              $region51: #{tpu_custom_call.1} parent=35 // pred_fallthru
                _
            $region36: #{tpu_custom_call.1} parent=31 // pred_fallthru
              _
            // Predicated region
            $region37: #{tpu_custom_call.1} parent=31 // pred_check
              _
            $region38: #{tpu_custom_call.1} parent=31 // pred_check_branch
              %145 = sbr.rel (0) target = $region40
            $region39: #{tpu_custom_call.1} parent=31 // pred_region
              %s147 = ssub.s32 16, 1
              loop: start=0, step=1, limit=1
              $region41: #{tpu_custom_call.1} parent=39 // loop_pre_header
                _
              $region42: #{tpu_custom_call.1} parent=39 // loop_header
                %s149 = sphi 0, %s153
                %p150 = scmp.ge.s32.totalorder %s149, 1
                %s154 = sphi %s139, %s139
                %s155 = sphi %s137, %s137
              $region43: #{tpu_custom_call.1} parent=39 // loop_header_branch
                %152 = sbr.rel (%p150) target = $region47
              $region44: #{tpu_custom_call.1} parent=39 // loop_body
                %v156 = vld [vmem:[%s154] sm:%s147]
                %157 = vst [vmem:[%s155] sm:%s147] %v156
                %v158 = vld [vmem:[%s154 + $0x8] sm:%s147]
                %159 = vst [vmem:[%s155 + $0x4] sm:%s147] %v158
                %v160 = vld [vmem:[%s154 + $0x10] sm:%s147]
                %161 = vst [vmem:[%s155 + $0x8] sm:%s147] %v160
              $region45: #{tpu_custom_call.1} parent=39 // loop_footer
                %s153 = sadd.s32 1, %s149
              $region46: #{tpu_custom_call.1} parent=39 // loop_footer_branch
                %148 = sbr.rel target = $region42
              $region47: #{tpu_custom_call.1} parent=39 // loop_exit
                _
            $region40: #{tpu_custom_call.1} parent=31 // pred_fallthru
              _
          $region32: #{tpu_custom_call.1} parent=27 // pred_fallthru
            _
          %188 = vnop
        $region28: #{tpu_custom_call.1} parent=23 // pred_fallthru
          _
      $region24: #{tpu_custom_call.1} parent=5 // pred_fallthru
        _
      %p189 = scmp.le.s32.totalorder 1, %s12
      %p190 = scmp.lt.s32.totalorder %s12, 3
      %p191 = pnand %p189, %p190
      %p192 = pneg %p191
      // Predicated region
      $region66: #{tpu_custom_call.1} parent=5 // pred_check
        _
      $region67: #{tpu_custom_call.1} parent=5 // pred_check_branch
        %194 = sbr.rel (%p191) target = $region69
      $region68: #{tpu_custom_call.1} parent=5 // pred_region
        %s195 = ssub.s32 %s12, 1
        %s196 = sand.u32 %s25, 1
        %s197 = sand.u32 %s25, 1
        %s198 = smul.addr %s197, 12
        %s199 = scalar_lea.vmem [#allocation2], %s198
        // Predicated region
        $region70: #{tpu_custom_call.1} parent=68 // pred_check
          %p200 = pneg %p38
        $region71: #{tpu_custom_call.1} parent=68 // pred_check_branch
          %202 = sbr.rel (%p200) target = $region73
        $region72: #{tpu_custom_call.1} parent=68 // pred_region
          _
        $region73: #{tpu_custom_call.1} parent=68 // pred_fallthru
          _
        %s203 = sand.u32 %s25, 1
        %s204 = sand.u32 %s25, 1
        %s205 = smul.addr %s204, 12
        %s206 = scalar_lea.vmem [#allocation2], %s205
        %p207 = pneg %p38
        %p208 = pneg %p35
        %p209 = pneg %p59
        %p210 = pneg %p56
        %p211 = pneg %p80
        %p212 = pneg %p77
        %p213 = pneg %p106
        %p214 = pneg %p103
        %s215 = sand.u32 %s93, 1
        %s216 = scalar_lea.sflag [#allocation4], %s215
        %s217 = sand.u32 %s93, 1
        %s218 = scalar_lea.vmem [#allocation3], %s217
        %v220 = vld [vmem:[%s199] sm:$0xf]
        %v221 = vld [vmem:[%s199 + $0x4] sm:$0xf]
        %v222 = vld [vmem:[%s199 + $0x8] sm:$0x3]
        %v223 = vld [vmem:[%s1] sm:$0xf]
        %v224 = vld [vmem:[%s1 + $0x4] sm:$0xf]
        %v225 = vld [vmem:[%s1 + $0x8] sm:$0xf]
        %v226 = vld [vmem:[%s1 + $0xc] sm:$0xf]
        %v227 = vld [vmem:[%s1 + $0x10] sm:$0xf]
        %v228 = vld [vmem:[%s1 + $0x14] sm:$0xf]
        %v229 = vld [vmem:[%s2] sm:$0xff]
        %v230 = vld [vmem:[%s2 + $0x8] sm:$0xff]
        %v231 = vld [vmem:[%s2 + $0x10] sm:$0xff]
        %v232 = vld [vmem:[%s2 + $0x18] sm:$0xff]
        %v233 = vld [vmem:[%s2 + $0x20] sm:$0xff]
        %v234 = vld [vmem:[%s2 + $0x28] sm:$0xff]
        %236 = vset.pattern.permute.xlu0 0
        %237 = vperm.xlu0 %236, %v229
        %v238 = vpop.permute.xlu0 %237
        %241 = vset.pattern.permute.xlu0 0
        %242 = vperm.xlu0 %241, %v230
        %v243 = vpop.permute.xlu0 %242
        %v247 = vunpack.c.l.b16 %v223
        %v248 = vunpack.c.l.b16 %v224
        %v249 = vpack.c.b16 %v248, %v247
        %v253 = vunpack.c.l.b16 %v220
        %v254 = vunpack.c.l.b16 %v221
        %v255 = vunpack.c.l.b16 %v222
        %v256 = vpack.c.b16 %v254, %v253
        %v257 = vpack.c.b16 %v255, %v255
        %vm259 = vcmask 162816
        %v261 = vsel %vm259, %v249, 0
        %vm263 = vcmask 1041408
        %v265 = vsel %vm263, %v257, 0
        %267 = vmatprep.subr.bf16.mxu0 0
        %268 = vmatpush1.bf16.msra.mxu0 0
        %269 = vmatprep.subr.bf16.mxu0 0
        %270 = vmatpush1.bf16.msra.mxu0 0
        %271 = vmatprep.subr.bf16.mxu0 0
        %272 = vmatpush1.bf16.msra.mxu0 0
        %273 = vmatprep.subr.bf16.mxu0 0
        %274 = vmatpush1.bf16.msra.mxu0 0
        %275 = vmatprep.subr.bf16.mxu0 0
        %276 = vmatpush1.bf16.msra.mxu0 0
        %277 = vmatprep.subr.bf16.mxu0 0
        %278 = vmatpush1.bf16.msra.mxu0 0
        %279 = vmatprep.subr.bf16.mxu0 0
        %280 = vmatpush1.bf16.msra.mxu0 %v265
        %281 = vmatprep.subr.bf16.mxu0 0
        %282 = vmatpush1.bf16.msra.mxu0 %v256
        %283 = vmatprep.subr.bf16.mxu0 0
        %284 = vmatpush2.bf16.msra.mxu0 0
        %285 = vmatprep.subr.bf16.mxu0 0
        %286 = vmatpush2.bf16.msra.mxu0 0
        %287 = vmatprep.subr.bf16.mxu0 0
        %288 = vmatpush2.bf16.msra.mxu0 0
        %289 = vmatprep.subr.bf16.mxu0 0
        %290 = vmatpush2.bf16.msra.mxu0 0
        %291 = vmatprep.subr.bf16.mxu0 0
        %292 = vmatpush2.bf16.msra.mxu0 0
        %293 = vmatprep.subr.bf16.mxu0 0
        %294 = vmatpush2.bf16.msra.mxu0 0
        %295 = vmatprep.subr.bf16.mxu0 0
        %296 = vmatpush2.bf16.msra.mxu0 0
        %297 = vmatprep.subr.bf16.mxu0 0
        %298 = vmatpush2.bf16.msra.mxu0 0
        %299 = vmatprep.mubr.bf16.mxu0 0
        %300 = vmatmul.mubr.bf16.gmra.mxu0 %v261
        %v301 = vpop.f32.mrf.mxu0
        %v302 = vadd.f32 %v238, %v301
        %v303 = vpop.f32.mrf.mxu0
        %v304 = vpop.f32.mrf.mxu0
        %v305 = vadd.f32 %v243, %v304
        %v306 = vpop.f32.mrf.mxu0
        %307 = vdwg.mxu0
        %v308 = vmax.f32 %v302, 0.0
        %v309 = vmax.f32 %v305, 0.0
        %v310 = vpack.c.bf16 %v309, %v308
        %312 = vset.pattern.permute.xlu0 0
        %313 = vperm.xlu0 %312, %v231
        %v314 = vpop.permute.xlu0 %313
        %vm316 = vcmask 80896
        %v318 = vsel %vm316, %v225, 0
        %vm320 = vcmask 1044480
        %v322 = vsel %vm320, %v310, 0
        %324 = vmatprep.subr.bf16.mxu0 0
        %325 = vmatpush1.bf16.msra.mxu0 0
        %326 = vmatprep.subr.bf16.mxu0 0
        %327 = vmatpush1.bf16.msra.mxu0 0
        %328 = vmatprep.subr.bf16.mxu0 0
        %329 = vmatpush1.bf16.msra.mxu0 0
        %330 = vmatprep.subr.bf16.mxu0 0
        %331 = vmatpush1.bf16.msra.mxu0 0
        %332 = vmatprep.subr.bf16.mxu0 0
        %333 = vmatpush1.bf16.msra.mxu0 0
        %334 = vmatprep.subr.bf16.mxu0 0
        %335 = vmatpush1.bf16.msra.mxu0 0
        %336 = vmatprep.subr.bf16.mxu0 0
        %337 = vmatpush1.bf16.msra.mxu0 0
        %338 = vmatprep.subr.bf16.mxu0 0
        %339 = vmatpush1.bf16.msra.mxu0 %v322
        %340 = vmatprep.subr.bf16.mxu0 0
        %341 = vmatpush2.bf16.msra.mxu0 0
        %342 = vmatprep.subr.bf16.mxu0 0
        %343 = vmatpush2.bf16.msra.mxu0 0
        %344 = vmatprep.subr.bf16.mxu0 0
        %345 = vmatpush2.bf16.msra.mxu0 0
        %346 = vmatprep.subr.bf16.mxu0 0
        %347 = vmatpush2.bf16.msra.mxu0 0
        %348 = vmatprep.subr.bf16.mxu0 0
        %349 = vmatpush2.bf16.msra.mxu0 0
        %350 = vmatprep.subr.bf16.mxu0 0
        %351 = vmatpush2.bf16.msra.mxu0 0
        %352 = vmatprep.subr.bf16.mxu0 0
        %353 = vmatpush2.bf16.msra.mxu0 0
        %354 = vmatprep.subr.bf16.mxu0 0
        %355 = vmatpush2.bf16.msra.mxu0 0
        %356 = vmatprep.mubr.bf16.mxu0 0
        %357 = vmatmul.mubr.bf16.gmra.mxu0 %v318
        %v358 = vpop.f32.mrf.mxu0
        %v359 = vadd.f32 %v314, %v358
        %v360 = vpop.f32.mrf.mxu0
        %v361 = vpop.f32.mrf.mxu0
        %v362 = vpop.f32.mrf.mxu0
        %363 = vdwg.mxu0
        %v364 = vmax.f32 %v359, 0.0
        %v365 = vpack.c.bf16 %v364, %v364
        %367 = vset.pattern.permute.xlu0 0
        %368 = vperm.xlu0 %367, %v232
        %v369 = vpop.permute.xlu0 %368
        %vm371 = vcmask 64512
        %v373 = vsel %vm371, %v226, 0
        %vm375 = vcmask 1043456
        %v377 = vsel %vm375, %v365, 0
        %379 = vmatprep.subr.bf16.mxu0 0
        %380 = vmatpush1.bf16.msra.mxu0 0
        %381 = vmatprep.subr.bf16.mxu0 0
        %382 = vmatpush1.bf16.msra.mxu0 0
        %383 = vmatprep.subr.bf16.mxu0 0
        %384 = vmatpush1.bf16.msra.mxu0 0
        %385 = vmatprep.subr.bf16.mxu0 0
        %386 = vmatpush1.bf16.msra.mxu0 0
        %387 = vmatprep.subr.bf16.mxu0 0
        %388 = vmatpush1.bf16.msra.mxu0 0
        %389 = vmatprep.subr.bf16.mxu0 0
        %390 = vmatpush1.bf16.msra.mxu0 0
        %391 = vmatprep.subr.bf16.mxu0 0
        %392 = vmatpush1.bf16.msra.mxu0 0
        %393 = vmatprep.subr.bf16.mxu0 0
        %394 = vmatpush1.bf16.msra.mxu0 %v377
        %395 = vmatprep.subr.bf16.mxu0 0
        %396 = vmatpush2.bf16.msra.mxu0 0
        %397 = vmatprep.subr.bf16.mxu0 0
        %398 = vmatpush2.bf16.msra.mxu0 0
        %399 = vmatprep.subr.bf16.mxu0 0
        %400 = vmatpush2.bf16.msra.mxu0 0
        %401 = vmatprep.subr.bf16.mxu0 0
        %402 = vmatpush2.bf16.msra.mxu0 0
        %403 = vmatprep.subr.bf16.mxu0 0
        %404 = vmatpush2.bf16.msra.mxu0 0
        %405 = vmatprep.subr.bf16.mxu0 0
        %406 = vmatpush2.bf16.msra.mxu0 0
        %407 = vmatprep.subr.bf16.mxu0 0
        %408 = vmatpush2.bf16.msra.mxu0 0
        %409 = vmatprep.subr.bf16.mxu0 0
        %410 = vmatpush2.bf16.msra.mxu0 0
        %411 = vmatprep.mubr.bf16.mxu0 0
        %412 = vmatmul.mubr.bf16.gmra.mxu0 %v373
        %v413 = vpop.f32.mrf.mxu0
        %v414 = vadd.f32 %v369, %v413
        %v415 = vpop.f32.mrf.mxu0
        %v416 = vpop.f32.mrf.mxu0
        %v417 = vpop.f32.mrf.mxu0
        %418 = vdwg.mxu0
        %v419 = vmax.f32 %v414, 0.0
        %v420 = vpack.c.bf16 %v419, %v419
        %422 = vset.pattern.permute.xlu0 0
        %423 = vperm.xlu0 %422, %v233
        %v424 = vpop.permute.xlu0 %423
        %v427 = vsel %vm371, %v227, 0
        %v430 = vsel %vm375, %v420, 0
        %432 = vmatprep.subr.bf16.mxu0 0
        %433 = vmatpush1.bf16.msra.mxu0 0
        %434 = vmatprep.subr.bf16.mxu0 0
        %435 = vmatpush1.bf16.msra.mxu0 0
        %436 = vmatprep.subr.bf16.mxu0 0
        %437 = vmatpush1.bf16.msra.mxu0 0
        %438 = vmatprep.subr.bf16.mxu0 0
        %439 = vmatpush1.bf16.msra.mxu0 0
        %440 = vmatprep.subr.bf16.mxu0 0
        %441 = vmatpush1.bf16.msra.mxu0 0
        %442 = vmatprep.subr.bf16.mxu0 0
        %443 = vmatpush1.bf16.msra.mxu0 0
        %444 = vmatprep.subr.bf16.mxu0 0
        %445 = vmatpush1.bf16.msra.mxu0 0
        %446 = vmatprep.subr.bf16.mxu0 0
        %447 = vmatpush1.bf16.msra.mxu0 %v430
        %448 = vmatprep.subr.bf16.mxu0 0
        %449 = vmatpush2.bf16.msra.mxu0 0
        %450 = vmatprep.subr.bf16.mxu0 0
        %451 = vmatpush2.bf16.msra.mxu0 0
        %452 = vmatprep.subr.bf16.mxu0 0
        %453 = vmatpush2.bf16.msra.mxu0 0
        %454 = vmatprep.subr.bf16.mxu0 0
        %455 = vmatpush2.bf16.msra.mxu0 0
        %456 = vmatprep.subr.bf16.mxu0 0
        %457 = vmatpush2.bf16.msra.mxu0 0
        %458 = vmatprep.subr.bf16.mxu0 0
        %459 = vmatpush2.bf16.msra.mxu0 0
        %460 = vmatprep.subr.bf16.mxu0 0
        %461 = vmatpush2.bf16.msra.mxu0 0
        %462 = vmatprep.subr.bf16.mxu0 0
        %463 = vmatpush2.bf16.msra.mxu0 0
        %464 = vmatprep.mubr.bf16.mxu0 0
        %465 = vmatmul.mubr.bf16.gmra.mxu0 %v427
        %v466 = vpop.f32.mrf.mxu0
        %v467 = vadd.f32 %v424, %v466
        %v468 = vpop.f32.mrf.mxu0
        %v469 = vpop.f32.mrf.mxu0
        %v470 = vpop.f32.mrf.mxu0
        %471 = vdwg.mxu0
        %v472 = vmax.f32 %v467, 0.0
        %v473 = vpack.c.bf16 %v472, %v472
        %475 = vset.pattern.permute.xlu0 0
        %476 = vperm.xlu0 %475, %v234
        %v477 = vpop.permute.xlu0 %476
        %vm479 = vcmask 31744
        %v481 = vsel %vm479, %v228, 0
        %v484 = vsel %vm263, %v473, 0
        %486 = vmatprep.subr.bf16.mxu0 0
        %487 = vmatpush1.bf16.msra.mxu0 0
        %488 = vmatprep.subr.bf16.mxu0 0
        %489 = vmatpush1.bf16.msra.mxu0 0
        %490 = vmatprep.subr.bf16.mxu0 0
        %491 = vmatpush1.bf16.msra.mxu0 0
        %492 = vmatprep.subr.bf16.mxu0 0
        %493 = vmatpush1.bf16.msra.mxu0 0
        %494 = vmatprep.subr.bf16.mxu0 0
        %495 = vmatpush1.bf16.msra.mxu0 0
        %496 = vmatprep.subr.bf16.mxu0 0
        %497 = vmatpush1.bf16.msra.mxu0 0
        %498 = vmatprep.subr.bf16.mxu0 0
        %499 = vmatpush1.bf16.msra.mxu0 0
        %500 = vmatprep.subr.bf16.mxu0 0
        %501 = vmatpush1.bf16.msra.mxu0 %v484
        %502 = vmatprep.subr.bf16.mxu0 0
        %503 = vmatpush2.bf16.msra.mxu0 0
        %504 = vmatprep.subr.bf16.mxu0 0
        %505 = vmatpush2.bf16.msra.mxu0 0
        %506 = vmatprep.subr.bf16.mxu0 0
        %507 = vmatpush2.bf16.msra.mxu0 0
        %508 = vmatprep.subr.bf16.mxu0 0
        %509 = vmatpush2.bf16.msra.mxu0 0
        %510 = vmatprep.subr.bf16.mxu0 0
        %511 = vmatpush2.bf16.msra.mxu0 0
        %512 = vmatprep.subr.bf16.mxu0 0
        %513 = vmatpush2.bf16.msra.mxu0 0
        %514 = vmatprep.subr.bf16.mxu0 0
        %515 = vmatpush2.bf16.msra.mxu0 0
        %516 = vmatprep.subr.bf16.mxu0 0
        %517 = vmatpush2.bf16.msra.mxu0 0
        %518 = vmatprep.mubr.bf16.mxu0 0
        %519 = vmatmul.mubr.bf16.gmra.mxu0 %v481
        %v520 = vpop.f32.mrf.mxu0
        %v521 = vadd.f32 %v477, %v520
        %v522 = vpop.f32.mrf.mxu0
        %v523 = vpop.f32.mrf.mxu0
        %v524 = vpop.f32.mrf.mxu0
        %525 = vdwg.mxu0
        %v526 = vsub.f32 0.0, %v521
        %v527 = vmul.f32 %v526, 1.442695
        %v528 = vpow.pop %v527
        %v529 = vadd.f32 %v528, 1.0
        %v530 = vrcp.pop %v529
        %531 = vst [vmem:[%s218] sm:$0x1] %v530
        %s532 = sand.u32 %s93, 1
        %s533 = scalar_lea.sflag [#allocation4], %s532
        %s534 = sand.u32 %s93, 1
        %s535 = scalar_lea.vmem [#allocation3], %s534
        // Predicated region
        $region74: #{tpu_custom_call.1} parent=68 // pred_check
          %p536 = pneg %p103
        $region75: #{tpu_custom_call.1} parent=68 // pred_check_branch
          %538 = sbr.rel (%p536) target = $region77
        $region76: #{tpu_custom_call.1} parent=68 // pred_region
          %s540 = ssub.s32 16, 16
          %541 = vsyncadd %s533, %s540
          %s542 = smul.addr %s17, 16
          %s543 = scalar_lea.hbm %s3, %s542
          %s545 = sshll.u32 %s535, 4
          %s546 = int_to_ptr.vmem [resolvable:$true] %s545
          %548 = dma.vmem_to_hbm [thread:$0]  %s546, 16, %s543, %s533
        $region77: #{tpu_custom_call.1} parent=68 // pred_fallthru
          _
      $region69: #{tpu_custom_call.1} parent=5 // pred_fallthru
        _
      %p549 = scmp.le.s32.totalorder 2, %s12
      // Predicated region
      $region78: #{tpu_custom_call.1} parent=5 // pred_check
        %p550 = pneg %p549
      $region79: #{tpu_custom_call.1} parent=5 // pred_check_branch
        %552 = sbr.rel (%p550) target = $region81
      $region80: #{tpu_custom_call.1} parent=5 // pred_region
        %s553 = ssub.s32 %s12, 2
        // Predicated region
        $region82: #{tpu_custom_call.1} parent=80 // pred_check
          %p554 = pneg %p109
        $region83: #{tpu_custom_call.1} parent=80 // pred_check_branch
          %556 = sbr.rel (%p554) target = $region85
        $region84: #{tpu_custom_call.1} parent=80 // pred_region
          %s557 = sand.u32 %s94, 1
          %s558 = scalar_lea.sflag [#allocation4], %s557
          %s559 = sand.u32 %s94, 1
          %s560 = scalar_lea.vmem [#allocation3], %s559
          %561 = dma.done %s558, 16
        $region85: #{tpu_custom_call.1} parent=80 // pred_fallthru
          _
      $region81: #{tpu_custom_call.1} parent=5 // pred_fallthru
        _
    $region6: #{tpu_custom_call.1} parent=1 // loop_footer
      %s16 = sadd.s32 1, %s12
    $region7: #{tpu_custom_call.1} parent=1 // loop_footer_branch
      %11 = sbr.rel target = $region3
    $region8: #{tpu_custom_call.1} parent=1 // loop_exit
      _
    %562 = vsyncpa [#allocation4], 1
    %s563 = scalar_lea.sflag [#allocation4], 1
    %564 = vsyncpa %s563, 1

</llo_original>
